<compile_context>
chip_gen: v7x
topology: tpu7x:2x2x1
jax: 0.10.0
libtpu: 0.0.40
codegen_flags: <defaults>
</compile_context>

<pallas_src>
import functools

import jax
import jax.numpy as jnp
from jax.experimental import pallas as pl
from jax.experimental.pallas import tpu as pltpu


def _round_up(v, m):
    return ((v + m - 1) // m) * m


def _mlp_kernel(n_hidden, *refs):
    """Fused MLP forward over one batch tile.

    refs = (x_ref,
            w0_ref, b0_ref, ..., w_{n_hidden-1}_ref, b_{n_hidden-1}_ref,
            w_row_ref, b_last_smem_ref,
            o_ref)

    Hidden layers: bf16 matmul (f32 accumulate) + fused f32 bias + ReLU.
    Last layer (out_dim == 1): f32 multiply + lane reduction + SMEM scalar bias,
    then a lane-dense (8, TB//8) store.
    """
    x_ref = refs[0]
    o_ref = refs[-1]
    params = refs[1:-1]

    # bf16 cast happens in VMEM; the input streams from HBM unpadded / uncast.
    h = x_ref[...].astype(jnp.bfloat16)          # (TB, D_in_k)
    h_f32 = None
    for li in range(n_hidden):
        w = params[2 * li][...]                  # bf16 (K_pad, N_pad), VMEM-resident
        b = params[2 * li + 1][...]              # f32  (1, N_pad)
        z = jnp.maximum(
            jnp.dot(h, w, preferred_element_type=jnp.float32) + b, 0.0)
        if li < n_hidden - 1:
            h = z.astype(jnp.bfloat16)           # bf16 for the next MXU matmul
        else:
            h_f32 = z                            # keep f32 for the final reduction

    # Final Linear(H, 1) as a VPU multiply + XLU lane reduce (no N=1 MXU matmul).
    w_row = params[-2][...]                      # f32 (1, H_last_pad)
    b_last = params[-1][0, 0]                    # f32 scalar from SMEM
    out_col = jnp.sum(h_f32 * w_row, axis=-1, keepdims=True) + b_last   # (TB, 1)
    # Small XLU relayout to a lane-dense output tile (8, TB//8).
    o_ref[...] = out_col.reshape(o_ref.shape).astype(o_ref.dtype)


def prepack_params(weights, biases, *, feature_multiple=128):
    """One-time prepacking of MLP parameters for the kernel (call once, reuse).

    weights[i]: (in_i, out_i); biases[i]: (1, out_i); last layer out_dim == 1.
      - Hidden weights -> bf16, zero-padded to (K_pad, N_pad) lane multiples.
      - Hidden biases  -> f32 rows (1, N_pad).
      - Last layer     -> f32 lane-dense row (1, H_pad) + (1, 1) f32 scalar bias.
    Zero padding keeps the math exact (ReLU(0)=0, zero columns contribute nothing).
    Note: on v6e/v7x with true hidden widths > 128, feature_multiple=256 fills
    the 256x256 MXU better; 128 is kept as the default (matches v5e, and small
    nets are memory/overhead-bound anyway).
    """
    n_layers = len(weights)
    n_hidden = n_layers - 1
    assert n_hidden >= 1, "MLP requires at least one hidden layer (fcn_dim non-empty)"
    assert weights[-1].shape[1] == 1, "last layer must have out_dim == 1"

    d_in = weights[0].shape[0]
    d_in_k = _round_up(d_in, 8)                  # MXU K sublane alignment only
    hid = [w.shape[1] for w in weights[:-1]]
    hid_pad = [_round_up(h, feature_multiple) for h in hid]
    in_pads = [d_in_k] + hid_pad[:-1]

    args = []
    for li in range(n_hidden):
        w, b = weights[li], biases[li]
        in_p, out_p = in_pads[li], hid_pad[li]
        w_p = jnp.pad(
            w, ((0, in_p - w.shape[0]), (0, out_p - w.shape[1]))
        ).astype(jnp.bfloat16)
        b_p = jnp.pad(
            jnp.reshape(b, (1, -1)).astype(jnp.float32),
            ((0, 0), (0, out_p - w.shape[1])),
        )
        args += [w_p, b_p]

    w_last, b_last = weights[-1], biases[-1]
    w_row = jnp.pad(
        w_last.T.astype(jnp.float32), ((0, 0), (0, hid_pad[-1] - w_last.shape[0]))
    )
    b_sc = jnp.reshape(b_last, (1, 1)).astype(jnp.float32)
    args += [w_row, b_sc]

    meta = {
        "n_hidden": n_hidden,
        "d_in": d_in,
        "d_in_k": d_in_k,
        "hidden_pad": tuple(hid_pad),
    }
    return args, meta


def _choose_batch_tile(B):
    """TB big enough to amortize ~0.35us/grid-step, a multiple of 1024 when
    possible (lane-dense (8, TB//8) output), and small enough to keep several
    grid steps so the 'parallel' axis feeds both v7x TensorCores."""
    if B <= 1024:
        return _round_up(max(B, 8), 8)           # single tile for tiny batches
    if B <= 4096:
        return _round_up(pl.cdiv(B, 2), 8)       # two roughly even tiles
    return int(min(4096, max(1024, _round_up(B // 8, 1024))))


def mlp_forward(x, packed_args, meta, *, batch_tile=None):
    """x: (B, input_dim). packed_args/meta from prepack_params.

    Returns (B,) f32, matching `MLP.forward(x).squeeze()` in eval mode.
    """
    B, d_in = x.shape
    assert d_in == meta["d_in"], (d_in, meta["d_in"])
    n_hidden = meta["n_hidden"]
    d_in_k = meta["d_in_k"]
    hidden_pad = meta["hidden_pad"]

    TB = _round_up(int(batch_tile), 8) if batch_tile is not None else _choose_batch_tile(B)
    B_pad = _round_up(B, TB)
    n_tiles = B_pad // TB

    # x streams per tile with no wrapper-side cast; only pad when the batch
    # doesn't divide TB or the input width isn't sublane-aligned.
    pad_b, pad_k = B_pad - B, d_in_k - d_in
    x_in = x if (pad_b == 0 and pad_k == 0) else jnp.pad(x, ((0, pad_b), (0, pad_k)))

    in_specs = [pl.BlockSpec((TB, d_in_k), lambda i: (i, 0))]
    for li in range(n_hidden):
        w, b = packed_args[2 * li], packed_args[2 * li + 1]
        in_specs += [
            pl.BlockSpec(w.shape, lambda i: (0, 0)),   # VMEM-resident across grid
            pl.BlockSpec(b.shape, lambda i: (0, 0)),
        ]
    w_row = packed_args[-2]
    in_specs += [
        pl.BlockSpec(w_row.shape, lambda i: (0, 0)),
        # (1,1) scalar bias in SMEM: no padded VMEM tile / pipeline DMA.
        pl.BlockSpec(memory_space=pltpu.MemorySpace.SMEM),
    ]

    # Lane-dense output: each grid step writes (8, TB//8); wrapper reshapes to (B,).
    out_specs = pl.BlockSpec((8, TB // 8), lambda i: (i, 0))
    out_shape = jax.ShapeDtypeStruct((n_tiles * 8, TB // 8), jnp.float32)

    # Cost estimate for XLA's scheduler.
    flops = 0
    k = d_in_k
    for n in hidden_pad:
        flops += 2 * B_pad * k * n
        k = n
    flops += 2 * B_pad * hidden_pad[-1]
    param_bytes = sum(int(a.size) * a.dtype.itemsize for a in packed_args)
    bytes_accessed = int(x_in.size) * x_in.dtype.itemsize + param_bytes + B_pad * 4
    cost = pl.CostEstimate(
        flops=int(flops), transcendentals=0, bytes_accessed=int(bytes_accessed)
    )

    # VMEM budget: double-buffered x/out tiles + resident params + live f32/bf16
    # activations; cap generation-aware (v5e/v6e: 128 MiB physical, v7x: 64 MiB).
    max_w = max(hidden_pad)
    vmem_est = (
        2 * TB * d_in_k * x_in.dtype.itemsize   # x tiles, double-buffered
        + 2 * TB * 4                            # out tiles, double-buffered
        + param_bytes                           # weights + biases resident
        + TB * max_w * (4 + 4 + 2)              # live f32 acts + bf16 copy
    )
    try:
        vmem_cap = int(pltpu.get_tpu_info().vmem_capacity_bytes)
    except Exception:
        vmem_cap = 64 << 20                     # assume smallest (v7x) if unknown
    vmem_limit = int(min(max(int(1.25 * vmem_est), 32 << 20), (vmem_cap * 3) // 4))

    out = pl.pallas_call(
        functools.partial(_mlp_kernel, n_hidden),
        out_shape=out_shape,
        grid=(n_tiles,),
        in_specs=in_specs,
        out_specs=out_specs,
        compiler_params=pltpu.CompilerParams(
            dimension_semantics=("parallel",),
            vmem_limit_bytes=vmem_limit,
        ),
        cost_estimate=cost,
    )(x_in, *packed_args)

    # out_dim == 1 -> (B,), same as PyTorch `.squeeze()`; drop batch padding.
    return out.reshape(B_pad)[:B]


def init_params(key, input_dim, fcn_dim):
    """Deterministic init matching nn.Linear shapes (stored transposed: (in, out))."""
    dims = [input_dim] + list(fcn_dim) + [1]
    weights, biases = [], []
    for i in range(len(dims) - 1):
        key, kw, kb = jax.random.split(key, 3)
        fan_in = dims[i]
        bound = 1.0 / (fan_in ** 0.5)
        w = jax.random.uniform(kw, (dims[i], dims[i + 1]), jnp.float32, -bound, bound)
        b = jax.random.uniform(kb, (1, dims[i + 1]), jnp.float32, -bound, bound)
        weights.append(w)
        biases.append(b)
    return weights, biases


if __name__ == "__main__":
    # Small shapes consistent with the module's forward pass.
    batch = 8
    input_dim = 32
    fcn_dim = [64, 32]     # hidden layer widths

    key = jax.random.PRNGKey(0)
    key, kx = jax.random.split(key)
    x = jax.random.normal(kx, (batch, input_dim), jnp.float32)

    weights, biases = init_params(key, input_dim, fcn_dim)

    # One-time parameter prepack (padding + bf16 cast), then the forward call.
    packed_args, meta = prepack_params(weights, biases)
    y = mlp_forward(x, packed_args, meta)
    y = jax.block_until_ready(y)

    # Pure-JAX f32 reference of the same math (kernel uses bf16 matmul inputs,
    # f32 accumulation -> loose tolerance).
    h = x
    for i, (w, b) in enumerate(zip(weights, biases)):
        h = h @ w + b
        if i < len(weights) - 1:
            h = jnp.maximum(h, 0.0)
    ref = jnp.squeeze(h, axis=-1)

    assert y.shape == (batch,)
    assert jnp.allclose(y, ref, atol=3e-2, rtol=3e-2), (y, ref)

    print("KERNEL_OK")
</pallas_src>

<mosaic_0001>
module attributes {stable_mosaic.version = 11 : i64} {
  func.func @_mlp_kernel(%arg0: i32, %arg1: memref<8x32xf32, #tpu.memory_space<vmem>>, %arg2: memref<32x128xbf16, #tpu.memory_space<vmem>>, %arg3: memref<1x128xf32, #tpu.memory_space<vmem>>, %arg4: memref<128x128xbf16, #tpu.memory_space<vmem>>, %arg5: memref<1x128xf32, #tpu.memory_space<vmem>>, %arg6: memref<1x128xf32, #tpu.memory_space<vmem>>, %arg7: memref<1x1xf32, #tpu.memory_space<smem>>, %arg8: memref<8x1xf32, #tpu.memory_space<vmem>>) attributes {dimension_semantics = [#tpu.dimension_semantics<parallel>], iteration_bounds = array<i64: 1>, scalar_prefetch = 0 : i64, scratch_operands = 0 : i64, tpu.core_type = #tpu.core_type<tc>, window_params = [{transform_indices = @transform_0, window_bounds = array<i64: 8, 32>}, {pipeline_mode = #tpu.pipeline_mode<synchronous>, transform_indices = @transform_1, window_bounds = array<i64: 32, 128>}, {pipeline_mode = #tpu.pipeline_mode<synchronous>, transform_indices = @transform_2, window_bounds = array<i64: 1, 128>}, {pipeline_mode = #tpu.pipeline_mode<synchronous>, transform_indices = @transform_3, window_bounds = array<i64: 128, 128>}, {pipeline_mode = #tpu.pipeline_mode<synchronous>, transform_indices = @transform_4, window_bounds = array<i64: 1, 128>}, {pipeline_mode = #tpu.pipeline_mode<synchronous>, transform_indices = @transform_5, window_bounds = array<i64: 1, 128>}, {transform_indices = @transform_6, window_bounds = array<i64: 1, 1>}, {transform_indices = @transform_7, window_bounds = array<i64: 8, 1>}]} {
    %c0 = arith.constant 0 : index
    %c0_0 = arith.constant 0 : index
    %0 = vector.load %arg1[%c0, %c0_0] : memref<8x32xf32, #tpu.memory_space<vmem>>, vector<8x32xf32>
    %1 = arith.truncf %0 : vector<8x32xf32> to vector<8x32xbf16>
    %c0_1 = arith.constant 0 : index
    %c0_2 = arith.constant 0 : index
    %2 = vector.load %arg2[%c0_1, %c0_2] : memref<32x128xbf16, #tpu.memory_space<vmem>>, vector<32x128xbf16>
    %c0_3 = arith.constant 0 : index
    %c0_4 = arith.constant 0 : index
    %3 = vector.load %arg3[%c0_3, %c0_4] : memref<1x128xf32, #tpu.memory_space<vmem>>, vector<1x128xf32>
    %cst = arith.constant dense<0.000000e+00> : vector<8x128xf32>
    %4 = tpu.matmul %1, %2, %cst {dimension_numbers = #tpu.dot_dimension_numbers<[1], [0], [0], [1], [0, 0, 1, 1], [], []>} : vector<8x32xbf16>, vector<32x128xbf16>, vector<8x128xf32> -> vector<8x128xf32>
    %5 = vector.broadcast %3 : vector<1x128xf32> to vector<8x128xf32>
    %6 = arith.addf %4, %5 : vector<8x128xf32>
    %cst_5 = arith.constant 0.000000e+00 : f32
    %7 = vector.broadcast %cst_5 : f32 to vector<8x128xf32>
    %8 = arith.maximumf %6, %7 : vector<8x128xf32>
    %9 = arith.truncf %8 : vector<8x128xf32> to vector<8x128xbf16>
    %c0_6 = arith.constant 0 : index
    %c0_7 = arith.constant 0 : index
    %10 = vector.load %arg4[%c0_6, %c0_7] : memref<128x128xbf16, #tpu.memory_space<vmem>>, vector<128x128xbf16>
    %c0_8 = arith.constant 0 : index
    %c0_9 = arith.constant 0 : index
    %11 = vector.load %arg5[%c0_8, %c0_9] : memref<1x128xf32, #tpu.memory_space<vmem>>, vector<1x128xf32>
    %cst_10 = arith.constant dense<0.000000e+00> : vector<8x128xf32>
    %12 = tpu.matmul %9, %10, %cst_10 {dimension_numbers = #tpu.dot_dimension_numbers<[1], [0], [0], [1], [0, 0, 1, 1], [], []>} : vector<8x128xbf16>, vector<128x128xbf16>, vector<8x128xf32> -> vector<8x128xf32>
    %13 = vector.broadcast %11 : vector<1x128xf32> to vector<8x128xf32>
    %14 = arith.addf %12, %13 : vector<8x128xf32>
    %cst_11 = arith.constant 0.000000e+00 : f32
    %15 = vector.broadcast %cst_11 : f32 to vector<8x128xf32>
    %16 = arith.maximumf %14, %15 : vector<8x128xf32>
    %c0_12 = arith.constant 0 : index
    %c0_13 = arith.constant 0 : index
    %17 = vector.load %arg6[%c0_12, %c0_13] : memref<1x128xf32, #tpu.memory_space<vmem>>, vector<1x128xf32>
    %c0_14 = arith.constant 0 : index
    %c0_15 = arith.constant 0 : index
    %18 = memref.load %arg7[%c0_14, %c0_15] : memref<1x1xf32, #tpu.memory_space<smem>>
    %19 = vector.broadcast %17 : vector<1x128xf32> to vector<8x128xf32>
    %20 = arith.mulf %16, %19 : vector<8x128xf32>
    %cst_16 = arith.constant dense<0.000000e+00> : vector<8xf32>
    %21 = vector.multi_reduction <add>, %20, %cst_16 [1] : vector<8x128xf32> to vector<8xf32>
    %22 = vector.shape_cast %21 : vector<8xf32> to vector<8x1xf32>
    %23 = vector.broadcast %18 : f32 to vector<8x1xf32>
    %24 = arith.addf %22, %23 : vector<8x1xf32>
    %c0_17 = arith.constant 0 : index
    %c0_18 = arith.constant 0 : index
    %25 = vector.load %arg8[%c0_17, %c0_18] : memref<8x1xf32, #tpu.memory_space<vmem>>, vector<8x1xf32>
    tpu.vector_store %arg8[%c0_17, %c0_18], %24 {strides = array<i32>} : memref<8x1xf32, #tpu.memory_space<vmem>>, vector<8x1xf32>,
    return
  }
  func.func @transform_0(%arg0: i32) -> (i32, i32) {
    %c0_i32 = arith.constant 0 : i32
    %c0_i32_0 = arith.constant 0 : i32
    return %arg0, %c0_i32 : i32, i32
  }
  func.func @transform_1(%arg0: i32) -> (i32, i32) {
    %c0_i32 = arith.constant 0 : i32
    %c0_i32_0 = arith.constant 0 : i32
    %c0_i32_1 = arith.constant 0 : i32
    return %c0_i32, %c0_i32_0 : i32, i32
  }
  func.func @transform_2(%arg0: i32) -> (i32, i32) {
    %c0_i32 = arith.constant 0 : i32
    %c0_i32_0 = arith.constant 0 : i32
    %c0_i32_1 = arith.constant 0 : i32
    return %c0_i32, %c0_i32_0 : i32, i32
  }
  func.func @transform_3(%arg0: i32) -> (i32, i32) {
    %c0_i32 = arith.constant 0 : i32
    %c0_i32_0 = arith.constant 0 : i32
    %c0_i32_1 = arith.constant 0 : i32
    return %c0_i32, %c0_i32_0 : i32, i32
  }
  func.func @transform_4(%arg0: i32) -> (i32, i32) {
    %c0_i32 = arith.constant 0 : i32
    %c0_i32_0 = arith.constant 0 : i32
    %c0_i32_1 = arith.constant 0 : i32
    return %c0_i32, %c0_i32_0 : i32, i32
  }
  func.func @transform_5(%arg0: i32) -> (i32, i32) {
    %c0_i32 = arith.constant 0 : i32
    %c0_i32_0 = arith.constant 0 : i32
    %c0_i32_1 = arith.constant 0 : i32
    return %c0_i32, %c0_i32_0 : i32, i32
  }
  func.func @transform_6(%arg0: i32) -> (i32, i32) {
    %c0_i32 = arith.constant 0 : i32
    %c0_i32_0 = arith.constant 0 : i32
    %c0_i32_1 = arith.constant 0 : i32
    return %c0_i32, %c0_i32_0 : i32, i32
  }
  func.func @transform_7(%arg0: i32) -> (i32, i32) {
    %c0_i32 = arith.constant 0 : i32
    %c0_i32_0 = arith.constant 0 : i32
    return %arg0, %c0_i32 : i32, i32
  }
}

</mosaic_0001>

<llo_original>
// kernel: tpu_custom_call.1
$region0: #{tpu_custom_call.1}
  #allocation0 [shape = 'u32[]', space=smem, size = 0x4, offset = 0x4, fixed_abs, tag = 'smem constant byte address 0x4 - core index']
  #allocation1 [shape = 'u32[144,128]{1,0:T(1,128)}', space=vmem, size = 0x12000, scoped, tag = 'internal scratch']
  #allocation2 [shape = 'f32[1,1]{1,0:T(1,128)S(6)}', space=smem, size = 0x200, scoped, tag = 'scoped memory for tpu_custom_call.1']
  %s0 = inlined_call_operand.hbm [shape: f32[8,32], index: 0, kind: input, shape index: {}]
  %s1 = inlined_call_operand.hbm [shape: bf16[32,128], index: 1, kind: input, shape index: {}]
  %s2 = inlined_call_operand.vmem [shape: f32[1,128], index: 2, kind: input, shape index: {}]
  %s3 = inlined_call_operand.hbm [shape: bf16[128,128], index: 3, kind: input, shape index: {}]
  %s4 = inlined_call_operand.vmem [shape: f32[1,128], index: 4, kind: input, shape index: {}]
  %s5 = inlined_call_operand.vmem [shape: f32[1,128], index: 5, kind: input, shape index: {}]
  %s6 = inlined_call_operand.<no memory space> [shape: f32[1,1], index: 6, kind: input, shape index: {}]
  %s7 = inlined_call_operand.vmem [shape: f32[8,1], index: 7, kind: output, shape index: {}]
  %s8 = sld [smem:[#allocation0]]
  $region50: #{tpu_custom_call.1} parent=0
    _
  %s10 = ssub.s32 1, %s8
  %s11 = scalar_select 0, %s10, %s8
  %12 = sst [smem:[#allocation2]] %s6
  $region1: #{tpu_custom_call.1} parent=0
    #allocation3 [shape = 'u8[4096]{0}', space=vmem, size = 0x1000, scoped, tag = 'input window, operand 0, single buffered']
    #allocation4 [shape = 's32[1]{0}', space=sflag, size = 0x4, scoped, tag = 'scoped memory for tpu_custom_call.1']
    #allocation5 [shape = 'u8[8192]{0}', space=vmem, size = 0x2000, scoped, tag = 'input window, operand 1, single buffered']
    #allocation6 [shape = 's32[1]{0}', space=sflag, size = 0x4, scoped, tag = 'scoped memory for tpu_custom_call.1']
    #allocation7 [shape = 'u8[32768]{0}', space=vmem, size = 0x8000, scoped, tag = 'input window, operand 3, single buffered']
    %13 = vsyncpa [#allocation4], 0
    %14 = vsyncpa [#allocation6], 0
    // Predicated region
    $region2: #{tpu_custom_call.1} parent=1 // pred_check
      _
    $region3: #{tpu_custom_call.1} parent=1 // pred_check_branch
      %16 = sbr.rel (0) target = $region5
    $region4: #{tpu_custom_call.1} parent=1 // pred_region
      %s18 = ssub.s32 128, 128
      %19 = vsyncadd [#allocation4], %s18
      %s21 = sshll.u32 [#allocation3], 4
      %s22 = int_to_ptr.vmem [resolvable:$true] %s21
      %24 = dma.hbm_to_vmem [thread:$0]  %s0, 128, %s22, [#allocation4]
    $region5: #{tpu_custom_call.1} parent=1 // pred_fallthru
      _
    // Predicated region
    $region6: #{tpu_custom_call.1} parent=1 // pred_check
      _
    $region7: #{tpu_custom_call.1} parent=1 // pred_check_branch
      %26 = sbr.rel (0) target = $region9
    $region8: #{tpu_custom_call.1} parent=1 // pred_region
      %s28 = ssub.s32 256, 256
      %29 = vsyncadd [#allocation6], %s28
      %s30 = sshll.u32 [#allocation5], 4
      %s31 = int_to_ptr.vmem [resolvable:$true] %s30
      %36 = dma.hbm_to_vmem [thread:$0]  %s1, 256, %s31, [#allocation6], 64, 64, 4
    $region9: #{tpu_custom_call.1} parent=1 // pred_fallthru
      _
    // Predicated region
    $region10: #{tpu_custom_call.1} parent=1 // pred_check
      _
    $region11: #{tpu_custom_call.1} parent=1 // pred_check_branch
      %38 = sbr.rel (0) target = $region13
    $region12: #{tpu_custom_call.1} parent=1 // pred_region
      _
    $region13: #{tpu_custom_call.1} parent=1 // pred_fallthru
      _
    // Predicated region
    $region14: #{tpu_custom_call.1} parent=1 // pred_check
      _
    $region15: #{tpu_custom_call.1} parent=1 // pred_check_branch
      %40 = sbr.rel (0) target = $region17
    $region16: #{tpu_custom_call.1} parent=1 // pred_region
      %s42 = ssub.s32 1024, 1024
      %43 = vsyncadd [#allocation6], %s42
      %s44 = sshll.u32 [#allocation7], 4
      %s45 = int_to_ptr.vmem [resolvable:$true] %s44
      %50 = dma.hbm_to_vmem [thread:$0]  %s3, 1024, %s45, [#allocation6], 64, 64, 4
    $region17: #{tpu_custom_call.1} parent=1 // pred_fallthru
      _
    // Predicated region
    $region18: #{tpu_custom_call.1} parent=1 // pred_check
      _
    $region19: #{tpu_custom_call.1} parent=1 // pred_check_branch
      %52 = sbr.rel (0) target = $region21
    $region20: #{tpu_custom_call.1} parent=1 // pred_region
      _
    $region21: #{tpu_custom_call.1} parent=1 // pred_fallthru
      _
    // Predicated region
    $region22: #{tpu_custom_call.1} parent=1 // pred_check
      _
    $region23: #{tpu_custom_call.1} parent=1 // pred_check_branch
      %54 = sbr.rel (0) target = $region25
    $region24: #{tpu_custom_call.1} parent=1 // pred_region
      _
    $region25: #{tpu_custom_call.1} parent=1 // pred_fallthru
      _
    // Predicated region
    $region26: #{tpu_custom_call.1} parent=1 // pred_check
      _
    $region27: #{tpu_custom_call.1} parent=1 // pred_check_branch
      %56 = sbr.rel (0) target = $region29
    $region28: #{tpu_custom_call.1} parent=1 // pred_region
      _
    $region29: #{tpu_custom_call.1} parent=1 // pred_fallthru
      _
    // Predicated region
    $region30: #{tpu_custom_call.1} parent=1 // pred_check
      _
    $region31: #{tpu_custom_call.1} parent=1 // pred_check_branch
      %58 = sbr.rel (0) target = $region33
    $region32: #{tpu_custom_call.1} parent=1 // pred_region
      %59 = dma.done [#allocation4], 128
    $region33: #{tpu_custom_call.1} parent=1 // pred_fallthru
      _
    // Predicated region
    $region34: #{tpu_custom_call.1} parent=1 // pred_check
      _
    $region35: #{tpu_custom_call.1} parent=1 // pred_check_branch
      %61 = sbr.rel (0) target = $region37
    $region36: #{tpu_custom_call.1} parent=1 // pred_region
      %62 = dma.done [#allocation6], 256
    $region37: #{tpu_custom_call.1} parent=1 // pred_fallthru
      _
    // Predicated region
    $region38: #{tpu_custom_call.1} parent=1 // pred_check
      _
    $region39: #{tpu_custom_call.1} parent=1 // pred_check_branch
      %64 = sbr.rel (0) target = $region41
    $region40: #{tpu_custom_call.1} parent=1 // pred_region
      %65 = dma.done [#allocation6], 1024
    $region41: #{tpu_custom_call.1} parent=1 // pred_fallthru
      _
    %v67 = vld [vmem:[#allocation3] sm:$0xff]
    %v68 = vpack.c.bf16 %v67, %v67
    %v69 = vld [vmem:[#allocation5] sm:$0xf]
    %v70 = vld [vmem:[#allocation5 + $0x4] sm:$0xf]
    %v71 = vld [vmem:[#allocation5 + $0x8] sm:$0xf]
    %v72 = vld [vmem:[#allocation5 + $0xc] sm:$0xf]
    %v73 = vld [vmem:[%s2] sm:$0x1]
    %v75 = vlaneseq
    %v76 = vshrl.u32 %v75, 7
    %v77 = vsub.s32 0, %v76
    %v78 = vrot.slane %v73, %v77
    %v84 = vunpack.c.l.b16 %v69
    %v85 = vunpack.c.l.b16 %v70
    %v86 = vunpack.c.l.b16 %v71
    %v87 = vunpack.c.l.b16 %v72
    %v88 = vpack.c.b16 %v85, %v84
    %v89 = vpack.c.b16 %v87, %v86
    %vm92 = vcmask 261120
    %v94 = vsel %vm92, %v68, 0
    %96 = vmatprep.subr.bf16.mxu0 0
    %97 = vmatpush1.bf16.msra.mxu0 %v88
    %98 = vmatprep.subr.bf16.mxu0 0
    %99 = vmatpush1.bf16.msra.mxu0 %v89
    %100 = vmatprep.subr.bf16.mxu0 0
    %101 = vmatpush1.bf16.msra.mxu0 0
    %102 = vmatprep.subr.bf16.mxu0 0
    %103 = vmatpush1.bf16.msra.mxu0 0
    %104 = vmatprep.subr.bf16.mxu0 0
    %105 = vmatpush1.bf16.msra.mxu0 0
    %106 = vmatprep.subr.bf16.mxu0 0
    %107 = vmatpush1.bf16.msra.mxu0 0
    %108 = vmatprep.subr.bf16.mxu0 0
    %109 = vmatpush1.bf16.msra.mxu0 0
    %110 = vmatprep.subr.bf16.mxu0 0
    %111 = vmatpush1.bf16.msra.mxu0 0
    %112 = vmatprep.subr.bf16.mxu0 0
    %113 = vmatpush1.bf16.msra.mxu0 0
    %114 = vmatprep.subr.bf16.mxu0 0
    %115 = vmatpush1.bf16.msra.mxu0 0
    %116 = vmatprep.subr.bf16.mxu0 0
    %117 = vmatpush1.bf16.msra.mxu0 0
    %118 = vmatprep.subr.bf16.mxu0 0
    %119 = vmatpush1.bf16.msra.mxu0 0
    %120 = vmatprep.subr.bf16.mxu0 0
    %121 = vmatpush1.bf16.msra.mxu0 0
    %122 = vmatprep.subr.bf16.mxu0 0
    %123 = vmatpush1.bf16.msra.mxu0 0
    %124 = vmatprep.subr.bf16.mxu0 0
    %125 = vmatpush1.bf16.msra.mxu0 0
    %126 = vmatprep.subr.bf16.mxu0 0
    %127 = vmatpush1.bf16.msra.mxu0 0
    %128 = vmatprep.mubr.bf16.mxu0 0
    %129 = vmatmul.mubr.bf16.gmra.mrb[0].mxu0 %v94
    %v130 = vpop.f32.mrb[0].mxu0
    %v131 = vadd.f32 %v78, %v130
    %v132 = vpop.f32.mrb[0].mxu0
    %v133 = vpop.f32.mrb[0].mxu0
    %v134 = vpop.f32.mrb[0].mxu0
    %135 = vdwg.mxu0
    %v136 = vmax.f32 %v131, 0.0
    %v137 = vpack.c.bf16 %v136, %v136
    %v138 = vld [vmem:[#allocation7] sm:$0xf]
    %v139 = vld [vmem:[#allocation7 + $0x4] sm:$0xf]
    %v140 = vld [vmem:[#allocation7 + $0x8] sm:$0xf]
    %v141 = vld [vmem:[#allocation7 + $0xc] sm:$0xf]
    %v142 = vld [vmem:[#allocation7 + $0x10] sm:$0xf]
    %v143 = vld [vmem:[#allocation7 + $0x14] sm:$0xf]
    %v144 = vld [vmem:[#allocation7 + $0x18] sm:$0xf]
    %v145 = vld [vmem:[#allocation7 + $0x1c] sm:$0xf]
    %v146 = vld [vmem:[#allocation7 + $0x20] sm:$0xf]
    %v147 = vld [vmem:[#allocation7 + $0x24] sm:$0xf]
    %v148 = vld [vmem:[#allocation7 + $0x28] sm:$0xf]
    %v149 = vld [vmem:[#allocation7 + $0x2c] sm:$0xf]
    %v150 = vld [vmem:[#allocation7 + $0x30] sm:$0xf]
    %v151 = vld [vmem:[#allocation7 + $0x34] sm:$0xf]
    %v152 = vld [vmem:[#allocation7 + $0x38] sm:$0xf]
    %v153 = vld [vmem:[#allocation7 + $0x3c] sm:$0xf]
    %v154 = vld [vmem:[%s4] sm:$0x1]
    %v156 = vlaneseq
    %v157 = vshrl.u32 %v156, 7
    %v158 = vsub.s32 0, %v157
    %v159 = vrot.slane %v154, %v158
    %v177 = vunpack.c.l.b16 %v138
    %v178 = vunpack.c.l.b16 %v139
    %v179 = vunpack.c.l.b16 %v140
    %v180 = vunpack.c.l.b16 %v141
    %v181 = vunpack.c.l.b16 %v142
    %v182 = vunpack.c.l.b16 %v143
    %v183 = vunpack.c.l.b16 %v144
    %v184 = vunpack.c.l.b16 %v145
    %v185 = vunpack.c.l.b16 %v146
    %v186 = vunpack.c.l.b16 %v147
    %v187 = vunpack.c.l.b16 %v148
    %v188 = vunpack.c.l.b16 %v149
    %v189 = vunpack.c.l.b16 %v150
    %v190 = vunpack.c.l.b16 %v151
    %v191 = vunpack.c.l.b16 %v152
    %v192 = vunpack.c.l.b16 %v153
    %v193 = vpack.c.b16 %v178, %v177
    %v194 = vpack.c.b16 %v180, %v179
    %v195 = vpack.c.b16 %v182, %v181
    %v196 = vpack.c.b16 %v184, %v183
    %v197 = vpack.c.b16 %v186, %v185
    %v198 = vpack.c.b16 %v188, %v187
    %v199 = vpack.c.b16 %v190, %v189
    %v200 = vpack.c.b16 %v192, %v191
    %209 = vmatprep.subr.bf16.mxu0 0
    %210 = vmatpush1.bf16.msra.mxu0 %v193
    %211 = vmatprep.subr.bf16.mxu0 0
    %212 = vmatpush1.bf16.msra.mxu0 %v194
    %213 = vmatprep.subr.bf16.mxu0 0
    %214 = vmatpush1.bf16.msra.mxu0 %v195
    %215 = vmatprep.subr.bf16.mxu0 0
    %216 = vmatpush1.bf16.msra.mxu0 %v196
    %217 = vmatprep.subr.bf16.mxu0 0
    %218 = vmatpush1.bf16.msra.mxu0 %v197
    %219 = vmatprep.subr.bf16.mxu0 0
    %220 = vmatpush1.bf16.msra.mxu0 %v198
    %221 = vmatprep.subr.bf16.mxu0 0
    %222 = vmatpush1.bf16.msra.mxu0 %v199
    %223 = vmatprep.subr.bf16.mxu0 0
    %224 = vmatpush1.bf16.msra.mxu0 %v200
    %225 = vmatprep.subr.bf16.mxu0 0
    %226 = vmatpush1.bf16.msra.mxu0 0
    %227 = vmatprep.subr.bf16.mxu0 0
    %228 = vmatpush1.bf16.msra.mxu0 0
    %229 = vmatprep.subr.bf16.mxu0 0
    %230 = vmatpush1.bf16.msra.mxu0 0
    %231 = vmatprep.subr.bf16.mxu0 0
    %232 = vmatpush1.bf16.msra.mxu0 0
    %233 = vmatprep.subr.bf16.mxu0 0
    %234 = vmatpush1.bf16.msra.mxu0 0
    %235 = vmatprep.subr.bf16.mxu0 0
    %236 = vmatpush1.bf16.msra.mxu0 0
    %237 = vmatprep.subr.bf16.mxu0 0
    %238 = vmatpush1.bf16.msra.mxu0 0
    %239 = vmatprep.subr.bf16.mxu0 0
    %240 = vmatpush1.bf16.msra.mxu0 0
    %241 = vmatprep.mubr.bf16.mxu0 0
    %242 = vmatmul.mubr.bf16.gmra.mrb[0].mxu0 %v137
    %v243 = vpop.f32.mrb[0].mxu0
    %v244 = vadd.f32 %v159, %v243
    %v245 = vpop.f32.mrb[0].mxu0
    %v246 = vpop.f32.mrb[0].mxu0
    %v247 = vpop.f32.mrb[0].mxu0
    %248 = vdwg.mxu0
    %v249 = vmax.f32 %v244, 0.0
    %v250 = vld [vmem:[%s5] sm:$0x1]
    %s251 = sld [smem:[#allocation2]]
    %v253 = vlaneseq
    %v254 = vshrl.u32 %v253, 7
    %v255 = vsub.s32 0, %v254
    %v256 = vrot.slane %v250, %v255
    %v258 = vmul.f32 %v249, %v256
    %259 = vadd.xlane.f32.xlu0 %v258
    %v260 = vpop.xlane.xlu0 %259
    %v261 = vstv %s251
    %v262 = vadd.f32 %v260, %v261
    %vm263 = vcmask 7168
    %264 = vst.msk [vmem:[%s7] sm:$0xff] %vm263, %v262
    // Predicated region
    $region42: #{tpu_custom_call.1} parent=1 // pred_check
      _
    $region43: #{tpu_custom_call.1} parent=1 // pred_check_branch
      %266 = sbr.rel (0) target = $region45
    $region44: #{tpu_custom_call.1} parent=1 // pred_region
      _
    $region45: #{tpu_custom_call.1} parent=1 // pred_fallthru
      _
    // Predicated region
    $region46: #{tpu_custom_call.1} parent=1 // pred_check
      _
    $region47: #{tpu_custom_call.1} parent=1 // pred_check_branch
      %268 = sbr.rel (0) target = $region49
    $region48: #{tpu_custom_call.1} parent=1 // pred_region
      _
    $region49: #{tpu_custom_call.1} parent=1 // pred_fallthru
      _
    %269 = vsyncpa [#allocation4], 1
    %270 = vsyncpa [#allocation6], 1

</llo_original>
